<compile_context>
chip_gen: v6e
topology: v6e:2x2x1
jax: 0.10.0
libtpu: 0.0.40
codegen_flags: <defaults>
</compile_context>

<pallas_src>
import functools

import jax
import jax.numpy as jnp
from jax.experimental import pallas as pl
from jax.experimental.pallas import tpu as pltpu

LANE = 128  # lane-padded width of the fused policy|value head output


def _prediction_kernel(x_ref, w1_ref, b1_ref, w2_ref, b2_ref,
                       wh_ref, bh_ref, o_ref, *,
                       reqs_per_tile, batch_per_req, out_dim):
    # layer1 + relu  (bf16 MXU operands, f32 accumulate / bias / ReLU)
    x = x_ref[...].astype(jnp.bfloat16)
    h = jnp.dot(x, w1_ref[...], preferred_element_type=jnp.float32) + b1_ref[...]
    h = jnp.maximum(h, 0.0).astype(jnp.bfloat16)

    # layer2 + relu
    h = jnp.dot(h, w2_ref[...], preferred_element_type=jnp.float32) + b2_ref[...]
    h = jnp.maximum(h, 0.0).astype(jnp.bfloat16)

    # fused, lane-padded policy|value head: (tile_rows, LANE)
    head = jnp.dot(h, wh_ref[...], preferred_element_type=jnp.float32) + bh_ref[...]

    # softmax over dim=0 (batch axis) *within each request*, per column.
    tile_rows, lanes = head.shape
    head3 = head.reshape(reqs_per_tile, batch_per_req, lanes)
    m = jnp.max(head3, axis=1, keepdims=True)
    e = jnp.exp(head3 - m)
    denom = jnp.sum(e, axis=1, keepdims=True)
    soft = (e / denom).reshape(tile_rows, lanes)  # exact divide: columns sum to 1

    # lanes [0, out_dim) -> softmaxed policy, lane out_dim -> raw value,
    # remaining lanes -> padding (sliced away in the wrapper).
    col = jax.lax.broadcasted_iota(jnp.int32, head.shape, dimension=1)
    o_ref[...] = jnp.where(col < out_dim, soft, head)


def pack_params(params):
    """One-time packing: transpose weights, fuse+lane-pad heads, cast to bf16."""
    width = params["w1"].shape[0]
    output_dim = params["wp"].shape[0]

    wh = jnp.zeros((width, LANE), jnp.float32)
    wh = wh.at[:, :output_dim].set(params["wp"].T)                    # policy cols
    wh = wh.at[:, output_dim:output_dim + 1].set(params["wv"].T)      # value col
    bh = jnp.zeros((1, LANE), jnp.float32)
    bh = bh.at[0, :output_dim].set(params["bp"])
    bh = bh.at[0, output_dim].set(params["bv"][0])

    return dict(
        w1=params["w1"].T.astype(jnp.bfloat16),                       # (in, width)
        b1=params["b1"].reshape(1, width).astype(jnp.float32),
        w2=params["w2"].T.astype(jnp.bfloat16),                       # (width, width)
        b2=params["b2"].reshape(1, width).astype(jnp.float32),
        wh=wh.astype(jnp.bfloat16),                                   # (width, LANE)
        bh=bh,                                                        # (1, LANE) f32
    )


def prediction_forward(x, packed, *, output_dim, batch_per_req, rows_per_tile=128):
    """x: (R, B, input_dim) f32 — R independent Prediction() calls with batch B.

    Returns (P, V): P (R, B, output_dim) softmaxed over the batch axis of each
    request (torch dim=0), V (R, B, 1).
    """
    R, B, input_dim = x.shape
    assert B == batch_per_req

    reqs_per_tile = max(rows_per_tile // B, 1)
    r_pad = ((R + reqs_per_tile - 1) // reqs_per_tile) * reqs_per_tile
    if r_pad != R:
        x = jnp.concatenate(
            [x, jnp.zeros((r_pad - R, B, input_dim), x.dtype)], axis=0)
    x_flat = x.reshape(r_pad * B, input_dim)

    tile_rows = reqs_per_tile * B
    grid = (r_pad // reqs_per_tile,)
    const = lambda i: (0, 0)  # weights: same (full-array) block every step -> VMEM-resident

    kernel = functools.partial(
        _prediction_kernel,
        reqs_per_tile=reqs_per_tile,
        batch_per_req=B,
        out_dim=output_dim,
    )

    out = pl.pallas_call(
        kernel,
        out_shape=jax.ShapeDtypeStruct((r_pad * B, LANE), jnp.float32),
        grid=grid,
        in_specs=[
            pl.BlockSpec((tile_rows, input_dim), lambda i: (i, 0)),   # x tile
            pl.BlockSpec(packed["w1"].shape, const),
            pl.BlockSpec(packed["b1"].shape, const),
            pl.BlockSpec(packed["w2"].shape, const),
            pl.BlockSpec(packed["b2"].shape, const),
            pl.BlockSpec(packed["wh"].shape, const),
            pl.BlockSpec(packed["bh"].shape, const),
        ],
        out_specs=pl.BlockSpec((tile_rows, LANE), lambda i: (i, 0)),
        compiler_params=pltpu.CompilerParams(
            dimension_semantics=("parallel",)),  # shard requests across TCs (v7x)
    )(x_flat, packed["w1"], packed["b1"], packed["w2"], packed["b2"],
      packed["wh"], packed["bh"])

    out = out.reshape(r_pad, B, LANE)[:R]
    P = out[:, :, :output_dim]
    V = out[:, :, output_dim:output_dim + 1]
    return P, V


def init_params(key, input_dim, output_dim, width):
    """Deterministic init mimicking PyTorch nn.Linear default (U[-1/sqrt(fan_in), +])."""
    def linear(k, fan_in, fan_out):
        kw, kb = jax.random.split(k)
        bound = 1.0 / jnp.sqrt(fan_in)
        w = jax.random.uniform(kw, (fan_out, fan_in), jnp.float32, -bound, bound)
        b = jax.random.uniform(kb, (fan_out,), jnp.float32, -bound, bound)
        return w, b

    k1, k2, k3, k4 = jax.random.split(key, 4)
    w1, b1 = linear(k1, input_dim, width)
    w2, b2 = linear(k2, width, width)
    wp, bp = linear(k3, width, output_dim)
    wv, bv = linear(k4, width, 1)
    return dict(w1=w1, b1=b1, w2=w2, b2=b2, wp=wp, bp=bp, wv=wv, bv=bv)


def reference_forward(x, params):
    """Pure-JAX f32 reference: the PyTorch module applied per request."""
    h = jnp.maximum(x @ params["w1"].T + params["b1"], 0.0)
    h = jnp.maximum(h @ params["w2"].T + params["b2"], 0.0)
    logits = h @ params["wp"].T + params["bp"]
    p = jax.nn.softmax(logits, axis=1)  # dim=0 of each request's (B, out) batch
    v = h @ params["wv"].T + params["bv"]
    return p, v


if __name__ == "__main__":
    key = jax.random.PRNGKey(0)
    k_x, k_p = jax.random.split(key)

    n_requests = 32   # independent Prediction() calls batched into one launch
    batch = 8         # per-call batch (softmax dim=0 is over these rows)
    input_dim = 32    # hidden-state width fed into Prediction
    output_dim = 2    # CartPole action count
    width = 128

    x = jax.random.normal(k_x, (n_requests, batch, input_dim), jnp.float32)
    params = init_params(k_p, input_dim, output_dim, width)

    # One-time parameter packing (hoisted out of the per-call path).
    packed = jax.tree_util.tree_map(jax.block_until_ready, pack_params(params))

    fwd = jax.jit(functools.partial(
        prediction_forward, output_dim=output_dim, batch_per_req=batch))
    P, V = fwd(x, packed)
    P = jax.block_until_ready(P)
    V = jax.block_until_ready(V)

    P_ref, V_ref = reference_forward(x, params)
    assert P.shape == (n_requests, batch, output_dim)
    assert V.shape == (n_requests, batch, 1)
    # Exact-divide softmax -> columns normalize to 1 (up to f32 rounding).
    assert jnp.allclose(P.sum(axis=1), 1.0, atol=1e-3)
    # Tolerance relaxed for bf16 MXU operands (f32 accumulation).
    assert jnp.allclose(P, P_ref, atol=2e-2, rtol=2e-2)
    assert jnp.allclose(V, V_ref, atol=2e-2, rtol=2e-2)

    print("KERNEL_OK")
</pallas_src>

<mosaic_0001>
module attributes {stable_mosaic.version = 11 : i64} {
  func.func @_prediction_kernel(%arg0: i32, %arg1: memref<128x32xf32, #tpu.memory_space<vmem>>, %arg2: memref<32x128xbf16, #tpu.memory_space<vmem>>, %arg3: memref<1x128xf32, #tpu.memory_space<vmem>>, %arg4: memref<128x128xbf16, #tpu.memory_space<vmem>>, %arg5: memref<1x128xf32, #tpu.memory_space<vmem>>, %arg6: memref<128x128xbf16, #tpu.memory_space<vmem>>, %arg7: memref<1x128xf32, #tpu.memory_space<vmem>>, %arg8: memref<128x128xf32, #tpu.memory_space<vmem>>) attributes {dimension_semantics = [#tpu.dimension_semantics<parallel>], iteration_bounds = array<i64: 2>, scalar_prefetch = 0 : i64, scratch_operands = 0 : i64, tpu.core_type = #tpu.core_type<tc>, window_params = [{transform_indices = @transform_0, window_bounds = array<i64: 128, 32>}, {pipeline_mode = #tpu.pipeline_mode<synchronous>, transform_indices = @transform_1, window_bounds = array<i64: 32, 128>}, {pipeline_mode = #tpu.pipeline_mode<synchronous>, transform_indices = @transform_2, window_bounds = array<i64: 1, 128>}, {pipeline_mode = #tpu.pipeline_mode<synchronous>, transform_indices = @transform_3, window_bounds = array<i64: 128, 128>}, {pipeline_mode = #tpu.pipeline_mode<synchronous>, transform_indices = @transform_4, window_bounds = array<i64: 1, 128>}, {pipeline_mode = #tpu.pipeline_mode<synchronous>, transform_indices = @transform_5, window_bounds = array<i64: 128, 128>}, {pipeline_mode = #tpu.pipeline_mode<synchronous>, transform_indices = @transform_6, window_bounds = array<i64: 1, 128>}, {transform_indices = @transform_7, window_bounds = array<i64: 128, 128>}]} {
    %c0 = arith.constant 0 : index
    %c0_0 = arith.constant 0 : index
    %0 = vector.load %arg1[%c0, %c0_0] : memref<128x32xf32, #tpu.memory_space<vmem>>, vector<128x32xf32>
    %1 = arith.truncf %0 : vector<128x32xf32> to vector<128x32xbf16>
    %c0_1 = arith.constant 0 : index
    %c0_2 = arith.constant 0 : index
    %2 = vector.load %arg2[%c0_1, %c0_2] : memref<32x128xbf16, #tpu.memory_space<vmem>>, vector<32x128xbf16>
    %cst = arith.constant dense<0.000000e+00> : vector<128x128xf32>
    %3 = tpu.matmul %1, %2, %cst {dimension_numbers = #tpu.dot_dimension_numbers<[1], [0], [0], [1], [0, 0, 1, 1], [], []>} : vector<128x32xbf16>, vector<32x128xbf16>, vector<128x128xf32> -> vector<128x128xf32>
    %c0_3 = arith.constant 0 : index
    %c0_4 = arith.constant 0 : index
    %4 = vector.load %arg3[%c0_3, %c0_4] : memref<1x128xf32, #tpu.memory_space<vmem>>, vector<1x128xf32>
    %5 = vector.broadcast %4 : vector<1x128xf32> to vector<128x128xf32>
    %6 = arith.addf %3, %5 : vector<128x128xf32>
    %cst_5 = arith.constant 0.000000e+00 : f32
    %7 = vector.broadcast %cst_5 : f32 to vector<128x128xf32>
    %8 = arith.maximumf %6, %7 : vector<128x128xf32>
    %9 = arith.truncf %8 : vector<128x128xf32> to vector<128x128xbf16>
    %c0_6 = arith.constant 0 : index
    %c0_7 = arith.constant 0 : index
    %10 = vector.load %arg4[%c0_6, %c0_7] : memref<128x128xbf16, #tpu.memory_space<vmem>>, vector<128x128xbf16>
    %cst_8 = arith.constant dense<0.000000e+00> : vector<128x128xf32>
    %11 = tpu.matmul %9, %10, %cst_8 {dimension_numbers = #tpu.dot_dimension_numbers<[1], [0], [0], [1], [0, 0, 1, 1], [], []>} : vector<128x128xbf16>, vector<128x128xbf16>, vector<128x128xf32> -> vector<128x128xf32>
    %c0_9 = arith.constant 0 : index
    %c0_10 = arith.constant 0 : index
    %12 = vector.load %arg5[%c0_9, %c0_10] : memref<1x128xf32, #tpu.memory_space<vmem>>, vector<1x128xf32>
    %13 = vector.broadcast %12 : vector<1x128xf32> to vector<128x128xf32>
    %14 = arith.addf %11, %13 : vector<128x128xf32>
    %cst_11 = arith.constant 0.000000e+00 : f32
    %15 = vector.broadcast %cst_11 : f32 to vector<128x128xf32>
    %16 = arith.maximumf %14, %15 : vector<128x128xf32>
    %17 = arith.truncf %16 : vector<128x128xf32> to vector<128x128xbf16>
    %c0_12 = arith.constant 0 : index
    %c0_13 = arith.constant 0 : index
    %18 = vector.load %arg6[%c0_12, %c0_13] : memref<128x128xbf16, #tpu.memory_space<vmem>>, vector<128x128xbf16>
    %cst_14 = arith.constant dense<0.000000e+00> : vector<128x128xf32>
    %19 = tpu.matmul %17, %18, %cst_14 {dimension_numbers = #tpu.dot_dimension_numbers<[1], [0], [0], [1], [0, 0, 1, 1], [], []>} : vector<128x128xbf16>, vector<128x128xbf16>, vector<128x128xf32> -> vector<128x128xf32>
    %c0_15 = arith.constant 0 : index
    %c0_16 = arith.constant 0 : index
    %20 = vector.load %arg7[%c0_15, %c0_16] : memref<1x128xf32, #tpu.memory_space<vmem>>, vector<1x128xf32>
    %21 = vector.broadcast %20 : vector<1x128xf32> to vector<128x128xf32>
    %22 = arith.addf %19, %21 : vector<128x128xf32>
    %23 = vector.shape_cast %22 : vector<128x128xf32> to vector<16x8x128xf32>
    %cst_17 = arith.constant dense<0xFF800000> : vector<16x128xf32>
    %24 = vector.multi_reduction <maximumf>, %23, %cst_17 [1] : vector<16x8x128xf32> to vector<16x128xf32>
    %25 = vector.shape_cast %24 : vector<16x128xf32> to vector<16x1x128xf32>
    %26 = vector.broadcast %25 : vector<16x1x128xf32> to vector<16x8x128xf32>
    %27 = arith.subf %23, %26 : vector<16x8x128xf32>
    %28 = math.exp %27 : vector<16x8x128xf32>
    %cst_18 = arith.constant dense<0.000000e+00> : vector<16x128xf32>
    %29 = vector.multi_reduction <add>, %28, %cst_18 [1] : vector<16x8x128xf32> to vector<16x128xf32>
    %30 = vector.shape_cast %29 : vector<16x128xf32> to vector<16x1x128xf32>
    %31 = vector.broadcast %30 : vector<16x1x128xf32> to vector<16x8x128xf32>
    %32 = arith.divf %28, %31 : vector<16x8x128xf32>
    %33 = vector.shape_cast %32 : vector<16x8x128xf32> to vector<128x128xf32>
    %34 = tpu.iota {dimensions = array<i32: 1>} : vector<128x128xi32>
    %c2_i32 = arith.constant 2 : i32
    %35 = vector.broadcast %c2_i32 : i32 to vector<128x128xi32>
    %36 = arith.cmpi slt, %34, %35 : vector<128x128xi32>
    %37 = arith.select %36, %33, %22 : vector<128x128xi1>, vector<128x128xf32>
    %c0_19 = arith.constant 0 : index
    %c0_20 = arith.constant 0 : index
    %38 = vector.load %arg8[%c0_19, %c0_20] : memref<128x128xf32, #tpu.memory_space<vmem>>, vector<128x128xf32>
    tpu.vector_store %arg8[%c0_19, %c0_20], %37 {strides = array<i32>} : memref<128x128xf32, #tpu.memory_space<vmem>>, vector<128x128xf32>,
    return
  }
  func.func @transform_0(%arg0: i32) -> (i32, i32) {
    %c0_i32 = arith.constant 0 : i32
    %c0_i32_0 = arith.constant 0 : i32
    return %arg0, %c0_i32 : i32, i32
  }
  func.func @transform_1(%arg0: i32) -> (i32, i32) {
    %c0_i32 = arith.constant 0 : i32
    %c0_i32_0 = arith.constant 0 : i32
    %c0_i32_1 = arith.constant 0 : i32
    return %c0_i32, %c0_i32_0 : i32, i32
  }
  func.func @transform_2(%arg0: i32) -> (i32, i32) {
    %c0_i32 = arith.constant 0 : i32
    %c0_i32_0 = arith.constant 0 : i32
    %c0_i32_1 = arith.constant 0 : i32
    return %c0_i32, %c0_i32_0 : i32, i32
  }
  func.func @transform_3(%arg0: i32) -> (i32, i32) {
    %c0_i32 = arith.constant 0 : i32
    %c0_i32_0 = arith.constant 0 : i32
    %c0_i32_1 = arith.constant 0 : i32
    return %c0_i32, %c0_i32_0 : i32, i32
  }
  func.func @transform_4(%arg0: i32) -> (i32, i32) {
    %c0_i32 = arith.constant 0 : i32
    %c0_i32_0 = arith.constant 0 : i32
    %c0_i32_1 = arith.constant 0 : i32
    return %c0_i32, %c0_i32_0 : i32, i32
  }
  func.func @transform_5(%arg0: i32) -> (i32, i32) {
    %c0_i32 = arith.constant 0 : i32
    %c0_i32_0 = arith.constant 0 : i32
    %c0_i32_1 = arith.constant 0 : i32
    return %c0_i32, %c0_i32_0 : i32, i32
  }
  func.func @transform_6(%arg0: i32) -> (i32, i32) {
    %c0_i32 = arith.constant 0 : i32
    %c0_i32_0 = arith.constant 0 : i32
    %c0_i32_1 = arith.constant 0 : i32
    return %c0_i32, %c0_i32_0 : i32, i32
  }
  func.func @transform_7(%arg0: i32) -> (i32, i32) {
    %c0_i32 = arith.constant 0 : i32
    %c0_i32_0 = arith.constant 0 : i32
    return %arg0, %c0_i32 : i32, i32
  }
}

</mosaic_0001>

<llo_original>
// kernel: prediction_forward.1
$region0: #{prediction_forward.1}
  #allocation0 [shape = 'u32[]', space=smem, size = 0x4, offset = 0x4, fixed_abs, tag = 'smem constant byte address 0x4 - core index']
  #allocation1 [shape = 'u32[144,128]{1,0:T(1,128)}', space=vmem, size = 0x12000, scoped, tag = 'internal scratch']
  %s0 = inlined_call_operand.hbm [shape: f32[256,32], index: 0, kind: input, shape index: {}]
  %s1 = inlined_call_operand.hbm [shape: bf16[32,128], index: 1, kind: input, shape index: {}]
  %s2 = inlined_call_operand.vmem [shape: f32[1,128], index: 2, kind: input, shape index: {}]
  %s3 = inlined_call_operand.hbm [shape: bf16[128,128], index: 3, kind: input, shape index: {}]
  %s4 = inlined_call_operand.vmem [shape: f32[1,128], index: 4, kind: input, shape index: {}]
  %s5 = inlined_call_operand.hbm [shape: bf16[128,128], index: 5, kind: input, shape index: {}]
  %s6 = inlined_call_operand.vmem [shape: f32[1,128], index: 6, kind: input, shape index: {}]
  %s7 = inlined_call_operand.vmem [shape: f32[256,128], index: 7, kind: output, shape index: {}]
  %s8 = sld [smem:[#allocation0]]
  $region77: #{prediction_forward.1} parent=0
    _
  %s10 = ssub.s32 1, %s8
  %s11 = scalar_select 0, %s10, %s8
  $region1: #{prediction_forward.1} parent=0
    #allocation2 [shape = 'u8[131072]{0}', space=vmem, size = 0x20000, scoped, tag = 'input window, operand 0']
    #allocation3 [shape = 's32[2]{0}', space=sflag, size = 0x8, scoped, tag = 'scoped memory for prediction_forward.1']
    #allocation4 [shape = 'u8[8192]{0}', space=vmem, size = 0x2000, scoped, tag = 'input window, operand 1, single buffered']
    #allocation5 [shape = 's32[1]{0}', space=sflag, size = 0x4, scoped, tag = 'scoped memory for prediction_forward.1']
    #allocation6 [shape = 'u8[32768]{0}', space=vmem, size = 0x8000, scoped, tag = 'input window, operand 3, single buffered']
    #allocation7 [shape = 'u8[32768]{0}', space=vmem, size = 0x8000, scoped, tag = 'input window, operand 5, single buffered']
    #allocation8 [shape = 's32[1]{0}', space=sflag, size = 0x4, scoped, tag = 'scoped memory for prediction_forward.1']
    %12 = vsyncpa [#allocation3], 0
    %s13 = scalar_lea.sflag [#allocation3], 1
    %14 = vsyncpa %s13, 0
    %15 = vsyncpa [#allocation5], 0
    %16 = vsyncpa [#allocation8], 0
    loop: start=0, step=1, limit=4
    $region2: #{prediction_forward.1} parent=1 // loop_pre_header
      _
    $region3: #{prediction_forward.1} parent=1 // loop_header
      %s18 = sphi 0, %s22
      %p19 = scmp.ge.s32.totalorder %s18, 4
      %s28 = sphi 0, %s30
      %s31 = sphi 0, %s28
      %s32 = sphi 0, %s31
      %s48 = sphi 0, %s32
      %s52 = sphi 0, %s52
      %s54 = sphi 0, %s52
      %s55 = sphi 0, %s54
      %s69 = sphi 0, %s55
      %s73 = sphi 0, %s73
      %s75 = sphi 0, %s73
      %s76 = sphi 0, %s75
      %s90 = sphi 0, %s76
      %s94 = sphi 0, %s94
      %s96 = sphi 0, %s94
      %s97 = sphi 0, %s96
      %s111 = sphi 0, %s97
      %s115 = sphi 0, %s115
      %s117 = sphi 0, %s115
      %s118 = sphi 0, %s117
      %s132 = sphi 0, %s118
      %s136 = sphi 0, %s136
      %s138 = sphi 0, %s136
      %s139 = sphi 0, %s138
      %s153 = sphi 0, %s139
      %s157 = sphi 0, %s157
      %s159 = sphi 0, %s157
      %s160 = sphi 0, %s159
      %s174 = sphi 0, %s160
      %s180 = sphi 0, %s182
      %s183 = sphi 0, %s180
      %s184 = sphi 0, %s183
      %s200 = sphi 0, %s184
    $region4: #{prediction_forward.1} parent=1 // loop_header_branch
      %21 = sbr.rel (%p19) target = $region8
    $region5: #{prediction_forward.1} parent=1 // loop_body
      %s23 = ssub.s32 %s18, 1
      %s24 = ssub.s32 %s18, 2
      %s25 = sadd.s32 %s18, 1
      %s26 = ssub.s32 %s18, %s25
      %p27 = scmp.eq.s32.totalorder %s26, 0
      %s29 = sadd.s32 %s28, 1
      %s30 = scalar_select %p27, %s28, %s29
      %p33 = pneg %p27
      %p34 = scmp.eq.s32.totalorder %s18, 1
      %p35 = por %p33, %p34
      %p36 = scmp.ne.s32.totalorder %s28, %s31
      %p37 = scmp.eq.s32.totalorder %s18, 0
      %p38 = por %p36, %p37
      %p39 = scmp.ne.s32.totalorder %s28, %s31
      %p40 = scmp.eq.s32.totalorder %s23, 1
      %p41 = por %p39, %p40
      %p42 = scmp.ne.s32.totalorder %s31, %s32
      %p43 = scmp.eq.s32.totalorder %s23, 0
      %p44 = por %p42, %p43
      %p45 = scmp.ne.s32.totalorder %s31, %s32
      %p46 = scmp.eq.s32.totalorder %s24, 1
      %p47 = por %p45, %p46
      %p49 = scmp.ne.s32.totalorder %s32, %s48
      %p50 = scmp.eq.s32.totalorder %s24, 0
      %p51 = por %p49, %p50
      %s53 = sadd.s32 %s52, 1
      %p56 = scmp.eq.s32.totalorder %s18, 1
      %p57 = scmp.ne.s32.totalorder %s52, %s54
      %p58 = scmp.eq.s32.totalorder %s18, 0
      %p59 = por %p57, %p58
      %p60 = scmp.ne.s32.totalorder %s52, %s54
      %p61 = scmp.eq.s32.totalorder %s23, 1
      %p62 = por %p60, %p61
      %p63 = scmp.ne.s32.totalorder %s54, %s55
      %p64 = scmp.eq.s32.totalorder %s23, 0
      %p65 = por %p63, %p64
      %p66 = scmp.ne.s32.totalorder %s54, %s55
      %p67 = scmp.eq.s32.totalorder %s24, 1
      %p68 = por %p66, %p67
      %p70 = scmp.ne.s32.totalorder %s55, %s69
      %p71 = scmp.eq.s32.totalorder %s24, 0
      %p72 = por %p70, %p71
      %s74 = sadd.s32 %s73, 1
      %p77 = scmp.eq.s32.totalorder %s18, 1
      %p78 = scmp.ne.s32.totalorder %s73, %s75
      %p79 = scmp.eq.s32.totalorder %s18, 0
      %p80 = por %p78, %p79
      %p81 = scmp.ne.s32.totalorder %s73, %s75
      %p82 = scmp.eq.s32.totalorder %s23, 1
      %p83 = por %p81, %p82
      %p84 = scmp.ne.s32.totalorder %s75, %s76
      %p85 = scmp.eq.s32.totalorder %s23, 0
      %p86 = por %p84, %p85
      %p87 = scmp.ne.s32.totalorder %s75, %s76
      %p88 = scmp.eq.s32.totalorder %s24, 1
      %p89 = por %p87, %p88
      %p91 = scmp.ne.s32.totalorder %s76, %s90
      %p92 = scmp.eq.s32.totalorder %s24, 0
      %p93 = por %p91, %p92
      %s95 = sadd.s32 %s94, 1
      %p98 = scmp.eq.s32.totalorder %s18, 1
      %p99 = scmp.ne.s32.totalorder %s94, %s96
      %p100 = scmp.eq.s32.totalorder %s18, 0
      %p101 = por %p99, %p100
      %p102 = scmp.ne.s32.totalorder %s94, %s96
      %p103 = scmp.eq.s32.totalorder %s23, 1
      %p104 = por %p102, %p103
      %p105 = scmp.ne.s32.totalorder %s96, %s97
      %p106 = scmp.eq.s32.totalorder %s23, 0
      %p107 = por %p105, %p106
      %p108 = scmp.ne.s32.totalorder %s96, %s97
      %p109 = scmp.eq.s32.totalorder %s24, 1
      %p110 = por %p108, %p109
      %p112 = scmp.ne.s32.totalorder %s97, %s111
      %p113 = scmp.eq.s32.totalorder %s24, 0
      %p114 = por %p112, %p113
      %s116 = sadd.s32 %s115, 1
      %p119 = scmp.eq.s32.totalorder %s18, 1
      %p120 = scmp.ne.s32.totalorder %s115, %s117
      %p121 = scmp.eq.s32.totalorder %s18, 0
      %p122 = por %p120, %p121
      %p123 = scmp.ne.s32.totalorder %s115, %s117
      %p124 = scmp.eq.s32.totalorder %s23, 1
      %p125 = por %p123, %p124
      %p126 = scmp.ne.s32.totalorder %s117, %s118
      %p127 = scmp.eq.s32.totalorder %s23, 0
      %p128 = por %p126, %p127
      %p129 = scmp.ne.s32.totalorder %s117, %s118
      %p130 = scmp.eq.s32.totalorder %s24, 1
      %p131 = por %p129, %p130
      %p133 = scmp.ne.s32.totalorder %s118, %s132
      %p134 = scmp.eq.s32.totalorder %s24, 0
      %p135 = por %p133, %p134
      %s137 = sadd.s32 %s136, 1
      %p140 = scmp.eq.s32.totalorder %s18, 1
      %p141 = scmp.ne.s32.totalorder %s136, %s138
      %p142 = scmp.eq.s32.totalorder %s18, 0
      %p143 = por %p141, %p142
      %p144 = scmp.ne.s32.totalorder %s136, %s138
      %p145 = scmp.eq.s32.totalorder %s23, 1
      %p146 = por %p144, %p145
      %p147 = scmp.ne.s32.totalorder %s138, %s139
      %p148 = scmp.eq.s32.totalorder %s23, 0
      %p149 = por %p147, %p148
      %p150 = scmp.ne.s32.totalorder %s138, %s139
      %p151 = scmp.eq.s32.totalorder %s24, 1
      %p152 = por %p150, %p151
      %p154 = scmp.ne.s32.totalorder %s139, %s153
      %p155 = scmp.eq.s32.totalorder %s24, 0
      %p156 = por %p154, %p155
      %s158 = sadd.s32 %s157, 1
      %p161 = scmp.eq.s32.totalorder %s18, 1
      %p162 = scmp.ne.s32.totalorder %s157, %s159
      %p163 = scmp.eq.s32.totalorder %s18, 0
      %p164 = por %p162, %p163
      %p165 = scmp.ne.s32.totalorder %s157, %s159
      %p166 = scmp.eq.s32.totalorder %s23, 1
      %p167 = por %p165, %p166
      %p168 = scmp.ne.s32.totalorder %s159, %s160
      %p169 = scmp.eq.s32.totalorder %s23, 0
      %p170 = por %p168, %p169
      %p171 = scmp.ne.s32.totalorder %s159, %s160
      %p172 = scmp.eq.s32.totalorder %s24, 1
      %p173 = por %p171, %p172
      %p175 = scmp.ne.s32.totalorder %s160, %s174
      %p176 = scmp.eq.s32.totalorder %s24, 0
      %p177 = por %p175, %p176
      %s178 = ssub.s32 %s18, %s25
      %p179 = scmp.eq.s32.totalorder %s178, 0
      %s181 = sadd.s32 %s180, 1
      %s182 = scalar_select %p179, %s180, %s181
      %p185 = pneg %p179
      %p186 = scmp.eq.s32.totalorder %s18, 1
      %p187 = por %p185, %p186
      %p188 = scmp.ne.s32.totalorder %s180, %s183
      %p189 = scmp.eq.s32.totalorder %s18, 0
      %p190 = por %p188, %p189
      %p191 = scmp.ne.s32.totalorder %s180, %s183
      %p192 = scmp.eq.s32.totalorder %s23, 1
      %p193 = por %p191, %p192
      %p194 = scmp.ne.s32.totalorder %s183, %s184
      %p195 = scmp.eq.s32.totalorder %s23, 0
      %p196 = por %p194, %p195
      %p197 = scmp.ne.s32.totalorder %s183, %s184
      %p198 = scmp.eq.s32.totalorder %s24, 1
      %p199 = por %p197, %p198
      %p201 = scmp.ne.s32.totalorder %s184, %s200
      %p202 = scmp.eq.s32.totalorder %s24, 0
      %p203 = por %p201, %p202
      %p204 = scmp.le.s32.totalorder 1, %s18
      %p205 = scmp.lt.s32.totalorder %s18, 3
      %p206 = pnand %p204, %p205
      %p207 = pneg %p206
      // Predicated region
      $region9: #{prediction_forward.1} parent=5 // pred_check
        _
      $region10: #{prediction_forward.1} parent=5 // pred_check_branch
        %209 = sbr.rel (%p206) target = $region12
      $region11: #{prediction_forward.1} parent=5 // pred_region
        %s210 = ssub.s32 %s18, 1
        // Predicated region
        $region13: #{prediction_forward.1} parent=11 // pred_check
          %p211 = pneg %p65
        $region14: #{prediction_forward.1} parent=11 // pred_check_branch
          %213 = sbr.rel (%p211) target = $region16
        $region15: #{prediction_forward.1} parent=11 // pred_region
          %s215 = ssub.s32 256, 256
          %216 = vsyncadd [#allocation5], %s215
          %s217 = sshll.u32 [#allocation4], 4
          %s218 = int_to_ptr.vmem [resolvable:$true] %s217
          %223 = dma.hbm_to_vmem [thread:$0]  %s1, 256, %s218, [#allocation5], 64, 64, 4
        $region16: #{prediction_forward.1} parent=11 // pred_fallthru
          _
        // Predicated region
        $region17: #{prediction_forward.1} parent=11 // pred_check
          %p224 = pneg %p86
        $region18: #{prediction_forward.1} parent=11 // pred_check_branch
          %226 = sbr.rel (%p224) target = $region20
        $region19: #{prediction_forward.1} parent=11 // pred_region
          _
        $region20: #{prediction_forward.1} parent=11 // pred_fallthru
          _
        // Predicated region
        $region21: #{prediction_forward.1} parent=11 // pred_check
          %p227 = pneg %p107
        $region22: #{prediction_forward.1} parent=11 // pred_check_branch
          %229 = sbr.rel (%p227) target = $region24
        $region23: #{prediction_forward.1} parent=11 // pred_region
          %s231 = ssub.s32 1024, 1024
          %232 = vsyncadd [#allocation5], %s231
          %s233 = sshll.u32 [#allocation6], 4
          %s234 = int_to_ptr.vmem [resolvable:$true] %s233
          %239 = dma.hbm_to_vmem [thread:$0]  %s3, 1024, %s234, [#allocation5], 64, 64, 4
        $region24: #{prediction_forward.1} parent=11 // pred_fallthru
          _
        // Predicated region
        $region25: #{prediction_forward.1} parent=11 // pred_check
          %p240 = pneg %p128
        $region26: #{prediction_forward.1} parent=11 // pred_check_branch
          %242 = sbr.rel (%p240) target = $region28
        $region27: #{prediction_forward.1} parent=11 // pred_region
          _
        $region28: #{prediction_forward.1} parent=11 // pred_fallthru
          _
        // Predicated region
        $region29: #{prediction_forward.1} parent=11 // pred_check
          %p243 = pneg %p149
        $region30: #{prediction_forward.1} parent=11 // pred_check_branch
          %245 = sbr.rel (%p243) target = $region32
        $region31: #{prediction_forward.1} parent=11 // pred_region
          %s247 = ssub.s32 1024, 1024
          %248 = vsyncadd [#allocation8], %s247
          %s249 = sshll.u32 [#allocation7], 4
          %s250 = int_to_ptr.vmem [resolvable:$true] %s249
          %255 = dma.hbm_to_vmem [thread:$0]  %s5, 1024, %s250, [#allocation8], 64, 64, 4
        $region32: #{prediction_forward.1} parent=11 // pred_fallthru
          _
        // Predicated region
        $region33: #{prediction_forward.1} parent=11 // pred_check
          %p256 = pneg %p170
        $region34: #{prediction_forward.1} parent=11 // pred_check_branch
          %258 = sbr.rel (%p256) target = $region36
        $region35: #{prediction_forward.1} parent=11 // pred_region
          _
        $region36: #{prediction_forward.1} parent=11 // pred_fallthru
          _
      $region12: #{prediction_forward.1} parent=5 // pred_fallthru
        _
      %p259 = scmp.lt.s32.totalorder %s18, 2
      // Predicated region
      $region37: #{prediction_forward.1} parent=5 // pred_check
        %p260 = pneg %p259
      $region38: #{prediction_forward.1} parent=5 // pred_check_branch
        %262 = sbr.rel (%p260) target = $region40
      $region39: #{prediction_forward.1} parent=5 // pred_region
        // Predicated region
        $region41: #{prediction_forward.1} parent=39 // pred_check
          %p263 = pneg %p38
        $region42: #{prediction_forward.1} parent=39 // pred_check_branch
          %265 = sbr.rel (%p263) target = $region44
        $region43: #{prediction_forward.1} parent=39 // pred_region
          %s266 = sand.u32 %s28, 1
          %s267 = scalar_lea.sflag [#allocation3], %s266
          %s268 = sand.u32 %s28, 1
          %s269 = smul.addr %s268, 128
          %s270 = scalar_lea.vmem [#allocation2], %s269
          %s271 = smul.u32 16, %s18
          %s273 = ssub.s32 2048, 2048
          %274 = vsyncadd %s267, %s273
          %s275 = smul.addr %s271, 128
          %s276 = scalar_lea.hbm %s0, %s275
          %s277 = sshll.u32 %s270, 4
          %s278 = int_to_ptr.vmem [resolvable:$true] %s277
          %283 = dma.hbm_to_vmem [thread:$0]  %s276, 2048, %s278, %s267, 128, 128, 8
        $region44: #{prediction_forward.1} parent=39 // pred_fallthru
          _
      $region40: #{prediction_forward.1} parent=5 // pred_fallthru
        _
      %p284 = scmp.le.s32.totalorder 1, %s18
      %p285 = scmp.lt.s32.totalorder %s18, 3
      %p286 = pnand %p284, %p285
      %p287 = pneg %p286
      // Predicated region
      $region45: #{prediction_forward.1} parent=5 // pred_check
        _
      $region46: #{prediction_forward.1} parent=5 // pred_check_branch
        %289 = sbr.rel (%p286) target = $region48
      $region47: #{prediction_forward.1} parent=5 // pred_region
        %s290 = ssub.s32 %s18, 1
        %s291 = sand.u32 %s31, 1
        %s292 = scalar_lea.sflag [#allocation3], %s291
        %s293 = sand.u32 %s31, 1
        %s294 = smul.addr %s293, 128
        %s295 = scalar_lea.vmem [#allocation2], %s294
        // Predicated region
        $region49: #{prediction_forward.1} parent=47 // pred_check
          %p296 = pneg %p44
        $region50: #{prediction_forward.1} parent=47 // pred_check_branch
          %298 = sbr.rel (%p296) target = $region52
        $region51: #{prediction_forward.1} parent=47 // pred_region
          %299 = dma.done %s292, 2048
        $region52: #{prediction_forward.1} parent=47 // pred_fallthru
          _
        // Predicated region
        $region53: #{prediction_forward.1} parent=47 // pred_check
          %p300 = pneg %p65
        $region54: #{prediction_forward.1} parent=47 // pred_check_branch
          %302 = sbr.rel (%p300) target = $region56
        $region55: #{prediction_forward.1} parent=47 // pred_region
          %303 = dma.done [#allocation5], 256
        $region56: #{prediction_forward.1} parent=47 // pred_fallthru
          _
        // Predicated region
        $region57: #{prediction_forward.1} parent=47 // pred_check
          %p304 = pneg %p107
        $region58: #{prediction_forward.1} parent=47 // pred_check_branch
          %306 = sbr.rel (%p304) target = $region60
        $region59: #{prediction_forward.1} parent=47 // pred_region
          %307 = dma.done [#allocation5], 1024
        $region60: #{prediction_forward.1} parent=47 // pred_fallthru
          _
        // Predicated region
        $region61: #{prediction_forward.1} parent=47 // pred_check
          %p308 = pneg %p149
        $region62: #{prediction_forward.1} parent=47 // pred_check_branch
          %310 = sbr.rel (%p308) target = $region64
        $region63: #{prediction_forward.1} parent=47 // pred_region
          %311 = dma.done [#allocation8], 1024
        $region64: #{prediction_forward.1} parent=47 // pred_fallthru
          _
        %s312 = sand.u32 %s31, 1
        %s313 = scalar_lea.sflag [#allocation3], %s312
        %s314 = sand.u32 %s31, 1
        %s315 = smul.addr %s314, 128
        %s316 = scalar_lea.vmem [#allocation2], %s315
        %p317 = pneg %p44
        %p318 = pneg %p41
        %p319 = pneg %p65
        %p320 = pneg %p62
        %p321 = pneg %p86
        %p322 = pneg %p83
        %p323 = pneg %p107
        %p324 = pneg %p104
        %p325 = pneg %p128
        %p326 = pneg %p125
        %p327 = pneg %p149
        %p328 = pneg %p146
        %p329 = pneg %p170
        %p330 = pneg %p167
        %p331 = pneg %p196
        %p332 = pneg %p193
        %s333 = smul.u32 16, %s23
        %p334 = scmp.lt.s32.totalorder %s333, 31
        %s335 = scalar_select %p334, %s333, 31
        %s336 = smul.addr %s335, 8
        %s337 = scalar_lea.vmem %s7, %s336
        %s338 = smul.u32 16, %s23
        %s339 = smul.u32 16, %s23
        %p340 = scmp.lt.s32.totalorder %s339, 31
        %s341 = scalar_select %p340, %s339, 31
        %s342 = smul.addr %s341, 8
        %s343 = scalar_lea.vmem %s7, %s342
        %s344 = smul.u32 16, %s23
        %v346 = vld [vmem:[%s295] sm:$0xff]
        %v347 = vld [vmem:[%s295 + $0x8] sm:$0xff]
        %v348 = vld [vmem:[%s295 + $0x10] sm:$0xff]
        %v349 = vld [vmem:[%s295 + $0x18] sm:$0xff]
        %v350 = vld [vmem:[%s295 + $0x20] sm:$0xff]
        %v351 = vld [vmem:[%s295 + $0x28] sm:$0xff]
        %v352 = vld [vmem:[%s295 + $0x30] sm:$0xff]
        %v353 = vld [vmem:[%s295 + $0x38] sm:$0xff]
        %v354 = vld [vmem:[%s295 + $0x40] sm:$0xff]
        %v355 = vld [vmem:[%s295 + $0x48] sm:$0xff]
        %v356 = vld [vmem:[%s295 + $0x50] sm:$0xff]
        %v357 = vld [vmem:[%s295 + $0x58] sm:$0xff]
        %v358 = vld [vmem:[%s295 + $0x60] sm:$0xff]
        %v359 = vld [vmem:[%s295 + $0x68] sm:$0xff]
        %v360 = vld [vmem:[%s295 + $0x70] sm:$0xff]
        %v361 = vld [vmem:[%s295 + $0x78] sm:$0xff]
        %v362 = vpack.c.bf16 %v347, %v346
        %v363 = vpack.c.bf16 %v349, %v348
        %v364 = vpack.c.bf16 %v351, %v350
        %v365 = vpack.c.bf16 %v353, %v352
        %v366 = vpack.c.bf16 %v355, %v354
        %v367 = vpack.c.bf16 %v357, %v356
        %v368 = vpack.c.bf16 %v359, %v358
        %v369 = vpack.c.bf16 %v361, %v360
        %v370 = vld [vmem:[#allocation4] sm:$0xf]
        %v371 = vld [vmem:[#allocation4 + $0x4] sm:$0xf]
        %v372 = vld [vmem:[#allocation4 + $0x8] sm:$0xf]
        %v373 = vld [vmem:[#allocation4 + $0xc] sm:$0xf]
        %v374 = vld [vmem:[%s2] sm:$0x1]
        %v376 = vlaneseq
        %v377 = vshrl.u32 %v376, 7
        %v378 = vsub.s32 0, %v377
        %v379 = vrot.slane %v374, %v378
        %v385 = vunpack.c.l.b16 %v370
        %v386 = vunpack.c.l.b16 %v371
        %v387 = vunpack.c.l.b16 %v372
        %v388 = vunpack.c.l.b16 %v373
        %v389 = vpack.c.b16 %v386, %v385
        %v390 = vpack.c.b16 %v388, %v387
        %vm393 = vcmask 261120
        %v395 = vsel %vm393, %v362, 0
        %v398 = vsel %vm393, %v363, 0
        %v401 = vsel %vm393, %v364, 0
        %v404 = vsel %vm393, %v365, 0
        %v407 = vsel %vm393, %v366, 0
        %v410 = vsel %vm393, %v367, 0
        %v413 = vsel %vm393, %v368, 0
        %v416 = vsel %vm393, %v369, 0
        %418 = vmatprep.subr.bf16.mxu0 0
        %419 = vmatpush1.bf16.msra.mxu0 0
        %420 = vmatprep.subr.bf16.mxu0 0
        %421 = vmatpush1.bf16.msra.mxu0 0
        %422 = vmatprep.subr.bf16.mxu0 0
        %423 = vmatpush1.bf16.msra.mxu0 0
        %424 = vmatprep.subr.bf16.mxu0 0
        %425 = vmatpush1.bf16.msra.mxu0 0
        %426 = vmatprep.subr.bf16.mxu0 0
        %427 = vmatpush1.bf16.msra.mxu0 0
        %428 = vmatprep.subr.bf16.mxu0 0
        %429 = vmatpush1.bf16.msra.mxu0 0
        %430 = vmatprep.subr.bf16.mxu0 0
        %431 = vmatpush1.bf16.msra.mxu0 %v390
        %432 = vmatprep.subr.bf16.mxu0 0
        %433 = vmatpush1.bf16.msra.mxu0 %v389
        %434 = vmatprep.subr.bf16.mxu0 0
        %435 = vmatpush2.bf16.msra.mxu0 0
        %436 = vmatprep.subr.bf16.mxu0 0
        %437 = vmatpush2.bf16.msra.mxu0 0
        %438 = vmatprep.subr.bf16.mxu0 0
        %439 = vmatpush2.bf16.msra.mxu0 0
        %440 = vmatprep.subr.bf16.mxu0 0
        %441 = vmatpush2.bf16.msra.mxu0 0
        %442 = vmatprep.subr.bf16.mxu0 0
        %443 = vmatpush2.bf16.msra.mxu0 0
        %444 = vmatprep.subr.bf16.mxu0 0
        %445 = vmatpush2.bf16.msra.mxu0 0
        %446 = vmatprep.subr.bf16.mxu0 0
        %447 = vmatpush2.bf16.msra.mxu0 0
        %448 = vmatprep.subr.bf16.mxu0 0
        %449 = vmatpush2.bf16.msra.mxu0 0
        %450 = vmatprep.mubr.bf16.mxu0 0
        %451 = vmatmul.mubr.bf16.gmra.mxu0 %v395
        %v452 = vpop.f32.mrf.mxu0
        %v453 = vadd.f32 %v379, %v452
        %v454 = vpop.f32.mrf.mxu0
        %v455 = vpop.f32.mrf.mxu0
        %v456 = vadd.f32 %v379, %v455
        %v457 = vpop.f32.mrf.mxu0
        %458 = vmatprep.mubr.bf16.mxu0 0
        %459 = vmatmul.mubr.bf16.gmra.mxu0 %v398
        %v460 = vpop.f32.mrf.mxu0
        %v461 = vadd.f32 %v379, %v460
        %v462 = vpop.f32.mrf.mxu0
        %v463 = vpop.f32.mrf.mxu0
        %v464 = vadd.f32 %v379, %v463
        %v465 = vpop.f32.mrf.mxu0
        %466 = vmatprep.mubr.bf16.mxu0 0
        %467 = vmatmul.mubr.bf16.gmra.mxu0 %v401
        %v468 = vpop.f32.mrf.mxu0
        %v469 = vadd.f32 %v379, %v468
        %v470 = vpop.f32.mrf.mxu0
        %v471 = vpop.f32.mrf.mxu0
        %v472 = vadd.f32 %v379, %v471
        %v473 = vpop.f32.mrf.mxu0
        %474 = vmatprep.mubr.bf16.mxu0 0
        %475 = vmatmul.mubr.bf16.gmra.mxu0 %v404
        %v476 = vpop.f32.mrf.mxu0
        %v477 = vadd.f32 %v379, %v476
        %v478 = vpop.f32.mrf.mxu0
        %v479 = vpop.f32.mrf.mxu0
        %v480 = vadd.f32 %v379, %v479
        %v481 = vpop.f32.mrf.mxu0
        %482 = vmatprep.mubr.bf16.mxu0 0
        %483 = vmatmul.mubr.bf16.gmra.mxu0 %v407
        %v484 = vpop.f32.mrf.mxu0
        %v485 = vadd.f32 %v379, %v484
        %v486 = vpop.f32.mrf.mxu0
        %v487 = vpop.f32.mrf.mxu0
        %v488 = vadd.f32 %v379, %v487
        %v489 = vpop.f32.mrf.mxu0
        %490 = vmatprep.mubr.bf16.mxu0 0
        %491 = vmatmul.mubr.bf16.gmra.mxu0 %v410
        %v492 = vpop.f32.mrf.mxu0
        %v493 = vadd.f32 %v379, %v492
        %v494 = vpop.f32.mrf.mxu0
        %v495 = vpop.f32.mrf.mxu0
        %v496 = vadd.f32 %v379, %v495
        %v497 = vpop.f32.mrf.mxu0
        %498 = vmatprep.mubr.bf16.mxu0 0
        %499 = vmatmul.mubr.bf16.gmra.mxu0 %v413
        %v500 = vpop.f32.mrf.mxu0
        %v501 = vadd.f32 %v379, %v500
        %v502 = vpop.f32.mrf.mxu0
        %v503 = vpop.f32.mrf.mxu0
        %v504 = vadd.f32 %v379, %v503
        %v505 = vpop.f32.mrf.mxu0
        %506 = vmatprep.mubr.bf16.mxu0 0
        %507 = vmatmul.mubr.bf16.gmra.mxu0 %v416
        %v508 = vpop.f32.mrf.mxu0
        %v509 = vadd.f32 %v379, %v508
        %v510 = vpop.f32.mrf.mxu0
        %v511 = vpop.f32.mrf.mxu0
        %v512 = vadd.f32 %v379, %v511
        %v513 = vpop.f32.mrf.mxu0
        %514 = vdwg.mxu0
        %v515 = vmax.f32 %v453, 0.0
        %v516 = vmax.f32 %v456, 0.0
        %v517 = vmax.f32 %v461, 0.0
        %v518 = vmax.f32 %v464, 0.0
        %v519 = vmax.f32 %v469, 0.0
        %v520 = vmax.f32 %v472, 0.0
        %v521 = vmax.f32 %v477, 0.0
        %v522 = vmax.f32 %v480, 0.0
        %v523 = vmax.f32 %v485, 0.0
        %v524 = vmax.f32 %v488, 0.0
        %v525 = vmax.f32 %v493, 0.0
        %v526 = vmax.f32 %v496, 0.0
        %v527 = vmax.f32 %v501, 0.0
        %v528 = vmax.f32 %v504, 0.0
        %v529 = vmax.f32 %v509, 0.0
        %v530 = vmax.f32 %v512, 0.0
        %v531 = vpack.c.bf16 %v516, %v515
        %v532 = vpack.c.bf16 %v518, %v517
        %v533 = vpack.c.bf16 %v520, %v519
        %v534 = vpack.c.bf16 %v522, %v521
        %v535 = vpack.c.bf16 %v524, %v523
        %v536 = vpack.c.bf16 %v526, %v525
        %v537 = vpack.c.bf16 %v528, %v527
        %v538 = vpack.c.bf16 %v530, %v529
        %v539 = vld [vmem:[#allocation6] sm:$0xf]
        %v540 = vld [vmem:[#allocation6 + $0x4] sm:$0xf]
        %v541 = vld [vmem:[#allocation6 + $0x8] sm:$0xf]
        %v542 = vld [vmem:[#allocation6 + $0xc] sm:$0xf]
        %v543 = vld [vmem:[#allocation6 + $0x10] sm:$0xf]
        %v544 = vld [vmem:[#allocation6 + $0x14] sm:$0xf]
        %v545 = vld [vmem:[#allocation6 + $0x18] sm:$0xf]
        %v546 = vld [vmem:[#allocation6 + $0x1c] sm:$0xf]
        %v547 = vld [vmem:[#allocation6 + $0x20] sm:$0xf]
        %v548 = vld [vmem:[#allocation6 + $0x24] sm:$0xf]
        %v549 = vld [vmem:[#allocation6 + $0x28] sm:$0xf]
        %v550 = vld [vmem:[#allocation6 + $0x2c] sm:$0xf]
        %v551 = vld [vmem:[#allocation6 + $0x30] sm:$0xf]
        %v552 = vld [vmem:[#allocation6 + $0x34] sm:$0xf]
        %v553 = vld [vmem:[#allocation6 + $0x38] sm:$0xf]
        %v554 = vld [vmem:[#allocation6 + $0x3c] sm:$0xf]
        %v555 = vld [vmem:[%s4] sm:$0x1]
        %v557 = vlaneseq
        %v558 = vshrl.u32 %v557, 7
        %v559 = vsub.s32 0, %v558
        %v560 = vrot.slane %v555, %v559
        %v578 = vunpack.c.l.b16 %v539
        %v579 = vunpack.c.l.b16 %v540
        %v580 = vunpack.c.l.b16 %v541
        %v581 = vunpack.c.l.b16 %v542
        %v582 = vunpack.c.l.b16 %v543
        %v583 = vunpack.c.l.b16 %v544
        %v584 = vunpack.c.l.b16 %v545
        %v585 = vunpack.c.l.b16 %v546
        %v586 = vunpack.c.l.b16 %v547
        %v587 = vunpack.c.l.b16 %v548
        %v588 = vunpack.c.l.b16 %v549
        %v589 = vunpack.c.l.b16 %v550
        %v590 = vunpack.c.l.b16 %v551
        %v591 = vunpack.c.l.b16 %v552
        %v592 = vunpack.c.l.b16 %v553
        %v593 = vunpack.c.l.b16 %v554
        %v594 = vpack.c.b16 %v579, %v578
        %v595 = vpack.c.b16 %v581, %v580
        %v596 = vpack.c.b16 %v583, %v582
        %v597 = vpack.c.b16 %v585, %v584
        %v598 = vpack.c.b16 %v587, %v586
        %v599 = vpack.c.b16 %v589, %v588
        %v600 = vpack.c.b16 %v591, %v590
        %v601 = vpack.c.b16 %v593, %v592
        %610 = vmatprep.subr.bf16.mxu0 0
        %611 = vmatpush1.bf16.msra.mxu0 %v601
        %612 = vmatprep.subr.bf16.mxu0 0
        %613 = vmatpush1.bf16.msra.mxu0 %v600
        %614 = vmatprep.subr.bf16.mxu0 0
        %615 = vmatpush1.bf16.msra.mxu0 %v599
        %616 = vmatprep.subr.bf16.mxu0 0
        %617 = vmatpush1.bf16.msra.mxu0 %v598
        %618 = vmatprep.subr.bf16.mxu0 0
        %619 = vmatpush1.bf16.msra.mxu0 %v597
        %620 = vmatprep.subr.bf16.mxu0 0
        %621 = vmatpush1.bf16.msra.mxu0 %v596
        %622 = vmatprep.subr.bf16.mxu0 0
        %623 = vmatpush1.bf16.msra.mxu0 %v595
        %624 = vmatprep.subr.bf16.mxu0 0
        %625 = vmatpush1.bf16.msra.mxu0 %v594
        %626 = vmatprep.subr.bf16.mxu0 0
        %627 = vmatpush2.bf16.msra.mxu0 0
        %628 = vmatprep.subr.bf16.mxu0 0
        %629 = vmatpush2.bf16.msra.mxu0 0
        %630 = vmatprep.subr.bf16.mxu0 0
        %631 = vmatpush2.bf16.msra.mxu0 0
        %632 = vmatprep.subr.bf16.mxu0 0
        %633 = vmatpush2.bf16.msra.mxu0 0
        %634 = vmatprep.subr.bf16.mxu0 0
        %635 = vmatpush2.bf16.msra.mxu0 0
        %636 = vmatprep.subr.bf16.mxu0 0
        %637 = vmatpush2.bf16.msra.mxu0 0
        %638 = vmatprep.subr.bf16.mxu0 0
        %639 = vmatpush2.bf16.msra.mxu0 0
        %640 = vmatprep.subr.bf16.mxu0 0
        %641 = vmatpush2.bf16.msra.mxu0 0
        %642 = vmatprep.mubr.bf16.mxu0 0
        %643 = vmatmul.mubr.bf16.gmra.mxu0 %v531
        %v644 = vpop.f32.mrf.mxu0
        %v645 = vadd.f32 %v560, %v644
        %v646 = vpop.f32.mrf.mxu0
        %v647 = vpop.f32.mrf.mxu0
        %v648 = vadd.f32 %v560, %v647
        %v649 = vpop.f32.mrf.mxu0
        %650 = vmatprep.mubr.bf16.mxu0 0
        %651 = vmatmul.mubr.bf16.gmra.mxu0 %v532
        %v652 = vpop.f32.mrf.mxu0
        %v653 = vadd.f32 %v560, %v652
        %v654 = vpop.f32.mrf.mxu0
        %v655 = vpop.f32.mrf.mxu0
        %v656 = vadd.f32 %v560, %v655
        %v657 = vpop.f32.mrf.mxu0
        %658 = vmatprep.mubr.bf16.mxu0 0
        %659 = vmatmul.mubr.bf16.gmra.mxu0 %v533
        %v660 = vpop.f32.mrf.mxu0
        %v661 = vadd.f32 %v560, %v660
        %v662 = vpop.f32.mrf.mxu0
        %v663 = vpop.f32.mrf.mxu0
        %v664 = vadd.f32 %v560, %v663
        %v665 = vpop.f32.mrf.mxu0
        %666 = vmatprep.mubr.bf16.mxu0 0
        %667 = vmatmul.mubr.bf16.gmra.mxu0 %v534
        %v668 = vpop.f32.mrf.mxu0
        %v669 = vadd.f32 %v560, %v668
        %v670 = vpop.f32.mrf.mxu0
        %v671 = vpop.f32.mrf.mxu0
        %v672 = vadd.f32 %v560, %v671
        %v673 = vpop.f32.mrf.mxu0
        %674 = vmatprep.mubr.bf16.mxu0 0
        %675 = vmatmul.mubr.bf16.gmra.mxu0 %v535
        %v676 = vpop.f32.mrf.mxu0
        %v677 = vadd.f32 %v560, %v676
        %v678 = vpop.f32.mrf.mxu0
        %v679 = vpop.f32.mrf.mxu0
        %v680 = vadd.f32 %v560, %v679
        %v681 = vpop.f32.mrf.mxu0
        %682 = vmatprep.mubr.bf16.mxu0 0
        %683 = vmatmul.mubr.bf16.gmra.mxu0 %v536
        %v684 = vpop.f32.mrf.mxu0
        %v685 = vadd.f32 %v560, %v684
        %v686 = vpop.f32.mrf.mxu0
        %v687 = vpop.f32.mrf.mxu0
        %v688 = vadd.f32 %v560, %v687
        %v689 = vpop.f32.mrf.mxu0
        %690 = vmatprep.mubr.bf16.mxu0 0
        %691 = vmatmul.mubr.bf16.gmra.mxu0 %v537
        %v692 = vpop.f32.mrf.mxu0
        %v693 = vadd.f32 %v560, %v692
        %v694 = vpop.f32.mrf.mxu0
        %v695 = vpop.f32.mrf.mxu0
        %v696 = vadd.f32 %v560, %v695
        %v697 = vpop.f32.mrf.mxu0
        %698 = vmatprep.mubr.bf16.mxu0 0
        %699 = vmatmul.mubr.bf16.gmra.mxu0 %v538
        %v700 = vpop.f32.mrf.mxu0
        %v701 = vadd.f32 %v560, %v700
        %v702 = vpop.f32.mrf.mxu0
        %v703 = vpop.f32.mrf.mxu0
        %v704 = vadd.f32 %v560, %v703
        %v705 = vpop.f32.mrf.mxu0
        %706 = vdwg.mxu0
        %v707 = vmax.f32 %v645, 0.0
        %v708 = vmax.f32 %v648, 0.0
        %v709 = vmax.f32 %v653, 0.0
        %v710 = vmax.f32 %v656, 0.0
        %v711 = vmax.f32 %v661, 0.0
        %v712 = vmax.f32 %v664, 0.0
        %v713 = vmax.f32 %v669, 0.0
        %v714 = vmax.f32 %v672, 0.0
        %v715 = vmax.f32 %v677, 0.0
        %v716 = vmax.f32 %v680, 0.0
        %v717 = vmax.f32 %v685, 0.0
        %v718 = vmax.f32 %v688, 0.0
        %v719 = vmax.f32 %v693, 0.0
        %v720 = vmax.f32 %v696, 0.0
        %v721 = vmax.f32 %v701, 0.0
        %v722 = vmax.f32 %v704, 0.0
        %v723 = vpack.c.bf16 %v708, %v707
        %v724 = vpack.c.bf16 %v710, %v709
        %v725 = vpack.c.bf16 %v712, %v711
        %v726 = vpack.c.bf16 %v714, %v713
        %v727 = vpack.c.bf16 %v716, %v715
        %v728 = vpack.c.bf16 %v718, %v717
        %v729 = vpack.c.bf16 %v720, %v719
        %v730 = vpack.c.bf16 %v722, %v721
        %v731 = vld [vmem:[#allocation7] sm:$0xf]
        %v732 = vld [vmem:[#allocation7 + $0x4] sm:$0xf]
        %v733 = vld [vmem:[#allocation7 + $0x8] sm:$0xf]
        %v734 = vld [vmem:[#allocation7 + $0xc] sm:$0xf]
        %v735 = vld [vmem:[#allocation7 + $0x10] sm:$0xf]
        %v736 = vld [vmem:[#allocation7 + $0x14] sm:$0xf]
        %v737 = vld [vmem:[#allocation7 + $0x18] sm:$0xf]
        %v738 = vld [vmem:[#allocation7 + $0x1c] sm:$0xf]
        %v739 = vld [vmem:[#allocation7 + $0x20] sm:$0xf]
        %v740 = vld [vmem:[#allocation7 + $0x24] sm:$0xf]
        %v741 = vld [vmem:[#allocation7 + $0x28] sm:$0xf]
        %v742 = vld [vmem:[#allocation7 + $0x2c] sm:$0xf]
        %v743 = vld [vmem:[#allocation7 + $0x30] sm:$0xf]
        %v744 = vld [vmem:[#allocation7 + $0x34] sm:$0xf]
        %v745 = vld [vmem:[#allocation7 + $0x38] sm:$0xf]
        %v746 = vld [vmem:[#allocation7 + $0x3c] sm:$0xf]
        %v747 = vld [vmem:[%s6] sm:$0x1]
        %v749 = vlaneseq
        %v750 = vshrl.u32 %v749, 7
        %v751 = vsub.s32 0, %v750
        %v752 = vrot.slane %v747, %v751
        %v770 = vunpack.c.l.b16 %v731
        %v771 = vunpack.c.l.b16 %v732
        %v772 = vunpack.c.l.b16 %v733
        %v773 = vunpack.c.l.b16 %v734
        %v774 = vunpack.c.l.b16 %v735
        %v775 = vunpack.c.l.b16 %v736
        %v776 = vunpack.c.l.b16 %v737
        %v777 = vunpack.c.l.b16 %v738
        %v778 = vunpack.c.l.b16 %v739
        %v779 = vunpack.c.l.b16 %v740
        %v780 = vunpack.c.l.b16 %v741
        %v781 = vunpack.c.l.b16 %v742
        %v782 = vunpack.c.l.b16 %v743
        %v783 = vunpack.c.l.b16 %v744
        %v784 = vunpack.c.l.b16 %v745
        %v785 = vunpack.c.l.b16 %v746
        %v786 = vpack.c.b16 %v771, %v770
        %v787 = vpack.c.b16 %v773, %v772
        %v788 = vpack.c.b16 %v775, %v774
        %v789 = vpack.c.b16 %v777, %v776
        %v790 = vpack.c.b16 %v779, %v778
        %v791 = vpack.c.b16 %v781, %v780
        %v792 = vpack.c.b16 %v783, %v782
        %v793 = vpack.c.b16 %v785, %v784
        %802 = vmatprep.subr.bf16.mxu0 0
        %803 = vmatpush1.bf16.msra.mxu0 %v793
        %804 = vmatprep.subr.bf16.mxu0 0
        %805 = vmatpush1.bf16.msra.mxu0 %v792
        %806 = vmatprep.subr.bf16.mxu0 0
        %807 = vmatpush1.bf16.msra.mxu0 %v791
        %808 = vmatprep.subr.bf16.mxu0 0
        %809 = vmatpush1.bf16.msra.mxu0 %v790
        %810 = vmatprep.subr.bf16.mxu0 0
        %811 = vmatpush1.bf16.msra.mxu0 %v789
        %812 = vmatprep.subr.bf16.mxu0 0
        %813 = vmatpush1.bf16.msra.mxu0 %v788
        %814 = vmatprep.subr.bf16.mxu0 0
        %815 = vmatpush1.bf16.msra.mxu0 %v787
        %816 = vmatprep.subr.bf16.mxu0 0
        %817 = vmatpush1.bf16.msra.mxu0 %v786
        %818 = vmatprep.subr.bf16.mxu0 0
        %819 = vmatpush2.bf16.msra.mxu0 0
        %820 = vmatprep.subr.bf16.mxu0 0
        %821 = vmatpush2.bf16.msra.mxu0 0
        %822 = vmatprep.subr.bf16.mxu0 0
        %823 = vmatpush2.bf16.msra.mxu0 0
        %824 = vmatprep.subr.bf16.mxu0 0
        %825 = vmatpush2.bf16.msra.mxu0 0
        %826 = vmatprep.subr.bf16.mxu0 0
        %827 = vmatpush2.bf16.msra.mxu0 0
        %828 = vmatprep.subr.bf16.mxu0 0
        %829 = vmatpush2.bf16.msra.mxu0 0
        %830 = vmatprep.subr.bf16.mxu0 0
        %831 = vmatpush2.bf16.msra.mxu0 0
        %832 = vmatprep.subr.bf16.mxu0 0
        %833 = vmatpush2.bf16.msra.mxu0 0
        %834 = vmatprep.mubr.bf16.mxu0 0
        %835 = vmatmul.mubr.bf16.gmra.mxu0 %v723
        %v836 = vpop.f32.mrf.mxu0
        %v837 = vadd.f32 %v752, %v836
        %v838 = vpop.f32.mrf.mxu0
        %v839 = vpop.f32.mrf.mxu0
        %v840 = vadd.f32 %v752, %v839
        %v841 = vpop.f32.mrf.mxu0
        %842 = vmatprep.mubr.bf16.mxu0 0
        %843 = vmatmul.mubr.bf16.gmra.mxu0 %v724
        %v844 = vpop.f32.mrf.mxu0
        %v845 = vadd.f32 %v752, %v844
        %v846 = vpop.f32.mrf.mxu0
        %v847 = vpop.f32.mrf.mxu0
        %v848 = vadd.f32 %v752, %v847
        %v849 = vpop.f32.mrf.mxu0
        %850 = vmatprep.mubr.bf16.mxu0 0
        %851 = vmatmul.mubr.bf16.gmra.mxu0 %v725
        %v852 = vpop.f32.mrf.mxu0
        %v853 = vadd.f32 %v752, %v852
        %v854 = vpop.f32.mrf.mxu0
        %v855 = vpop.f32.mrf.mxu0
        %v856 = vadd.f32 %v752, %v855
        %v857 = vpop.f32.mrf.mxu0
        %858 = vmatprep.mubr.bf16.mxu0 0
        %859 = vmatmul.mubr.bf16.gmra.mxu0 %v726
        %v860 = vpop.f32.mrf.mxu0
        %v861 = vadd.f32 %v752, %v860
        %v862 = vpop.f32.mrf.mxu0
        %v863 = vpop.f32.mrf.mxu0
        %v864 = vadd.f32 %v752, %v863
        %v865 = vpop.f32.mrf.mxu0
        %866 = vmatprep.mubr.bf16.mxu0 0
        %867 = vmatmul.mubr.bf16.gmra.mxu0 %v727
        %v868 = vpop.f32.mrf.mxu0
        %v869 = vadd.f32 %v752, %v868
        %v870 = vpop.f32.mrf.mxu0
        %v871 = vpop.f32.mrf.mxu0
        %v872 = vadd.f32 %v752, %v871
        %v873 = vpop.f32.mrf.mxu0
        %874 = vmatprep.mubr.bf16.mxu0 0
        %875 = vmatmul.mubr.bf16.gmra.mxu0 %v728
        %v876 = vpop.f32.mrf.mxu0
        %v877 = vadd.f32 %v752, %v876
        %v878 = vpop.f32.mrf.mxu0
        %v879 = vpop.f32.mrf.mxu0
        %v880 = vadd.f32 %v752, %v879
        %v881 = vpop.f32.mrf.mxu0
        %882 = vmatprep.mubr.bf16.mxu0 0
        %883 = vmatmul.mubr.bf16.gmra.mxu0 %v729
        %v884 = vpop.f32.mrf.mxu0
        %v885 = vadd.f32 %v752, %v884
        %v886 = vpop.f32.mrf.mxu0
        %v887 = vpop.f32.mrf.mxu0
        %v888 = vadd.f32 %v752, %v887
        %v889 = vpop.f32.mrf.mxu0
        %890 = vmatprep.mubr.bf16.mxu0 0
        %891 = vmatmul.mubr.bf16.gmra.mxu0 %v730
        %v892 = vpop.f32.mrf.mxu0
        %v893 = vadd.f32 %v752, %v892
        %v894 = vpop.f32.mrf.mxu0
        %v895 = vpop.f32.mrf.mxu0
        %v896 = vadd.f32 %v752, %v895
        %v897 = vpop.f32.mrf.mxu0
        %898 = vdwg.mxu0
        %v899 = vrot.slane %v837, 4
        %v900 = vmax.f32 %v837, %v899
        %v901 = vrot.slane %v900, 2
        %v902 = vmax.f32 %v900, %v901
        %v903 = vrot.slane %v902, 1
        %v904 = vmax.f32 %v902, %v903
        %v905 = vrot.slane %v840, 4
        %v906 = vmax.f32 %v840, %v905
        %v907 = vrot.slane %v906, 2
        %v908 = vmax.f32 %v906, %v907
        %v909 = vrot.slane %v908, 1
        %v910 = vmax.f32 %v908, %v909
        %v911 = vrot.slane %v845, 4
        %v912 = vmax.f32 %v845, %v911
        %v913 = vrot.slane %v912, 2
        %v914 = vmax.f32 %v912, %v913
        %v915 = vrot.slane %v914, 1
        %v916 = vmax.f32 %v914, %v915
        %v917 = vrot.slane %v848, 4
        %v918 = vmax.f32 %v848, %v917
        %v919 = vrot.slane %v918, 2
        %v920 = vmax.f32 %v918, %v919
        %v921 = vrot.slane %v920, 1
        %v922 = vmax.f32 %v920, %v921
        %v923 = vrot.slane %v853, 4
        %v924 = vmax.f32 %v853, %v923
        %v925 = vrot.slane %v924, 2
        %v926 = vmax.f32 %v924, %v925
        %v927 = vrot.slane %v926, 1
        %v928 = vmax.f32 %v926, %v927
        %v929 = vrot.slane %v856, 4
        %v930 = vmax.f32 %v856, %v929
        %v931 = vrot.slane %v930, 2
        %v932 = vmax.f32 %v930, %v931
        %v933 = vrot.slane %v932, 1
        %v934 = vmax.f32 %v932, %v933
        %v935 = vrot.slane %v861, 4
        %v936 = vmax.f32 %v861, %v935
        %v937 = vrot.slane %v936, 2
        %v938 = vmax.f32 %v936, %v937
        %v939 = vrot.slane %v938, 1
        %v940 = vmax.f32 %v938, %v939
        %v941 = vrot.slane %v864, 4
        %v942 = vmax.f32 %v864, %v941
        %v943 = vrot.slane %v942, 2
        %v944 = vmax.f32 %v942, %v943
        %v945 = vrot.slane %v944, 1
        %v946 = vmax.f32 %v944, %v945
        %v947 = vrot.slane %v869, 4
        %v948 = vmax.f32 %v869, %v947
        %v949 = vrot.slane %v948, 2
        %v950 = vmax.f32 %v948, %v949
        %v951 = vrot.slane %v950, 1
        %v952 = vmax.f32 %v950, %v951
        %v953 = vrot.slane %v872, 4
        %v954 = vmax.f32 %v872, %v953
        %v955 = vrot.slane %v954, 2
        %v956 = vmax.f32 %v954, %v955
        %v957 = vrot.slane %v956, 1
        %v958 = vmax.f32 %v956, %v957
        %v959 = vrot.slane %v877, 4
        %v960 = vmax.f32 %v877, %v959
        %v961 = vrot.slane %v960, 2
        %v962 = vmax.f32 %v960, %v961
        %v963 = vrot.slane %v962, 1
        %v964 = vmax.f32 %v962, %v963
        %v965 = vrot.slane %v880, 4
        %v966 = vmax.f32 %v880, %v965
        %v967 = vrot.slane %v966, 2
        %v968 = vmax.f32 %v966, %v967
        %v969 = vrot.slane %v968, 1
        %v970 = vmax.f32 %v968, %v969
        %v971 = vrot.slane %v885, 4
        %v972 = vmax.f32 %v885, %v971
        %v973 = vrot.slane %v972, 2
        %v974 = vmax.f32 %v972, %v973
        %v975 = vrot.slane %v974, 1
        %v976 = vmax.f32 %v974, %v975
        %v977 = vrot.slane %v888, 4
        %v978 = vmax.f32 %v888, %v977
        %v979 = vrot.slane %v978, 2
        %v980 = vmax.f32 %v978, %v979
        %v981 = vrot.slane %v980, 1
        %v982 = vmax.f32 %v980, %v981
        %v983 = vrot.slane %v893, 4
        %v984 = vmax.f32 %v893, %v983
        %v985 = vrot.slane %v984, 2
        %v986 = vmax.f32 %v984, %v985
        %v987 = vrot.slane %v986, 1
        %v988 = vmax.f32 %v986, %v987
        %v989 = vrot.slane %v896, 4
        %v990 = vmax.f32 %v896, %v989
        %v991 = vrot.slane %v990, 2
        %v992 = vmax.f32 %v990, %v991
        %v993 = vrot.slane %v992, 1
        %v994 = vmax.f32 %v992, %v993
        %v995 = vsub.f32 %v837, %v904
        %v996 = vsub.f32 %v840, %v910
        %v997 = vsub.f32 %v845, %v916
        %v998 = vsub.f32 %v848, %v922
        %v999 = vsub.f32 %v853, %v928
        %v1000 = vsub.f32 %v856, %v934
        %v1001 = vsub.f32 %v861, %v940
        %v1002 = vsub.f32 %v864, %v946
        %v1003 = vsub.f32 %v869, %v952
        %v1004 = vsub.f32 %v872, %v958
        %v1005 = vsub.f32 %v877, %v964
        %v1006 = vsub.f32 %v880, %v970
        %v1007 = vsub.f32 %v885, %v976
        %v1008 = vsub.f32 %v888, %v982
        %v1009 = vsub.f32 %v893, %v988
        %v1010 = vsub.f32 %v896, %v994
        %v1011 = vmul.f32 %v995, 1.442695
        %v1012 = vpow.pop %v1011
        %v1013 = vmul.f32 %v996, 1.442695
        %v1014 = vpow.pop %v1013
        %v1015 = vmul.f32 %v997, 1.442695
        %v1016 = vpow.pop %v1015
        %v1017 = vmul.f32 %v998, 1.442695
        %v1018 = vpow.pop %v1017
        %v1019 = vmul.f32 %v999, 1.442695
        %v1020 = vpow.pop %v1019
        %v1021 = vmul.f32 %v1000, 1.442695
        %v1022 = vpow.pop %v1021
        %v1023 = vmul.f32 %v1001, 1.442695
        %v1024 = vpow.pop %v1023
        %v1025 = vmul.f32 %v1002, 1.442695
        %v1026 = vpow.pop %v1025
        %v1027 = vmul.f32 %v1003, 1.442695
        %v1028 = vpow.pop %v1027
        %v1029 = vmul.f32 %v1004, 1.442695
        %v1030 = vpow.pop %v1029
        %v1031 = vmul.f32 %v1005, 1.442695
        %v1032 = vpow.pop %v1031
        %v1033 = vmul.f32 %v1006, 1.442695
        %v1034 = vpow.pop %v1033
        %v1035 = vmul.f32 %v1007, 1.442695
        %v1036 = vpow.pop %v1035
        %v1037 = vmul.f32 %v1008, 1.442695
        %v1038 = vpow.pop %v1037
        %v1039 = vmul.f32 %v1009, 1.442695
        %v1040 = vpow.pop %v1039
        %v1041 = vmul.f32 %v1010, 1.442695
        %v1042 = vpow.pop %v1041
        %v1043 = vrot.slane %v1012, 4
        %v1044 = vadd.f32 %v1012, %v1043
        %v1045 = vrot.slane %v1044, 2
        %v1046 = vadd.f32 %v1044, %v1045
        %v1047 = vrot.slane %v1046, 1
        %v1048 = vadd.f32 %v1046, %v1047
        %v1049 = vrot.slane %v1014, 4
        %v1050 = vadd.f32 %v1014, %v1049
        %v1051 = vrot.slane %v1050, 2
        %v1052 = vadd.f32 %v1050, %v1051
        %v1053 = vrot.slane %v1052, 1
        %v1054 = vadd.f32 %v1052, %v1053
        %v1055 = vrot.slane %v1016, 4
        %v1056 = vadd.f32 %v1016, %v1055
        %v1057 = vrot.slane %v1056, 2
        %v1058 = vadd.f32 %v1056, %v1057
        %v1059 = vrot.slane %v1058, 1
        %v1060 = vadd.f32 %v1058, %v1059
        %v1061 = vrot.slane %v1018, 4
        %v1062 = vadd.f32 %v1018, %v1061
        %v1063 = vrot.slane %v1062, 2
        %v1064 = vadd.f32 %v1062, %v1063
        %v1065 = vrot.slane %v1064, 1
        %v1066 = vadd.f32 %v1064, %v1065
        %v1067 = vrot.slane %v1020, 4
        %v1068 = vadd.f32 %v1020, %v1067
        %v1069 = vrot.slane %v1068, 2
        %v1070 = vadd.f32 %v1068, %v1069
        %v1071 = vrot.slane %v1070, 1
        %v1072 = vadd.f32 %v1070, %v1071
        %v1073 = vrot.slane %v1022, 4
        %v1074 = vadd.f32 %v1022, %v1073
        %v1075 = vrot.slane %v1074, 2
        %v1076 = vadd.f32 %v1074, %v1075
        %v1077 = vrot.slane %v1076, 1
        %v1078 = vadd.f32 %v1076, %v1077
        %v1079 = vrot.slane %v1024, 4
        %v1080 = vadd.f32 %v1024, %v1079
        %v1081 = vrot.slane %v1080, 2
        %v1082 = vadd.f32 %v1080, %v1081
        %v1083 = vrot.slane %v1082, 1
        %v1084 = vadd.f32 %v1082, %v1083
        %v1085 = vrot.slane %v1026, 4
        %v1086 = vadd.f32 %v1026, %v1085
        %v1087 = vrot.slane %v1086, 2
        %v1088 = vadd.f32 %v1086, %v1087
        %v1089 = vrot.slane %v1088, 1
        %v1090 = vadd.f32 %v1088, %v1089
        %v1091 = vrot.slane %v1028, 4
        %v1092 = vadd.f32 %v1028, %v1091
        %v1093 = vrot.slane %v1092, 2
        %v1094 = vadd.f32 %v1092, %v1093
        %v1095 = vrot.slane %v1094, 1
        %v1096 = vadd.f32 %v1094, %v1095
        %v1097 = vrot.slane %v1030, 4
        %v1098 = vadd.f32 %v1030, %v1097
        %v1099 = vrot.slane %v1098, 2
        %v1100 = vadd.f32 %v1098, %v1099
        %v1101 = vrot.slane %v1100, 1
        %v1102 = vadd.f32 %v1100, %v1101
        %v1103 = vrot.slane %v1032, 4
        %v1104 = vadd.f32 %v1032, %v1103
        %v1105 = vrot.slane %v1104, 2
        %v1106 = vadd.f32 %v1104, %v1105
        %v1107 = vrot.slane %v1106, 1
        %v1108 = vadd.f32 %v1106, %v1107
        %v1109 = vrot.slane %v1034, 4
        %v1110 = vadd.f32 %v1034, %v1109
        %v1111 = vrot.slane %v1110, 2
        %v1112 = vadd.f32 %v1110, %v1111
        %v1113 = vrot.slane %v1112, 1
        %v1114 = vadd.f32 %v1112, %v1113
        %v1115 = vrot.slane %v1036, 4
        %v1116 = vadd.f32 %v1036, %v1115
        %v1117 = vrot.slane %v1116, 2
        %v1118 = vadd.f32 %v1116, %v1117
        %v1119 = vrot.slane %v1118, 1
        %v1120 = vadd.f32 %v1118, %v1119
        %v1121 = vrot.slane %v1038, 4
        %v1122 = vadd.f32 %v1038, %v1121
        %v1123 = vrot.slane %v1122, 2
        %v1124 = vadd.f32 %v1122, %v1123
        %v1125 = vrot.slane %v1124, 1
        %v1126 = vadd.f32 %v1124, %v1125
        %v1127 = vrot.slane %v1040, 4
        %v1128 = vadd.f32 %v1040, %v1127
        %v1129 = vrot.slane %v1128, 2
        %v1130 = vadd.f32 %v1128, %v1129
        %v1131 = vrot.slane %v1130, 1
        %v1132 = vadd.f32 %v1130, %v1131
        %v1133 = vrot.slane %v1042, 4
        %v1134 = vadd.f32 %v1042, %v1133
        %v1135 = vrot.slane %v1134, 2
        %v1136 = vadd.f32 %v1134, %v1135
        %v1137 = vrot.slane %v1136, 1
        %v1138 = vadd.f32 %v1136, %v1137
        %v1139 = vrcp.pop %v1048
        %v1140 = vmul.f32 %v1012, %v1139
        %v1141 = vrcp.pop %v1054
        %v1142 = vmul.f32 %v1014, %v1141
        %v1143 = vrcp.pop %v1060
        %v1144 = vmul.f32 %v1016, %v1143
        %v1145 = vrcp.pop %v1066
        %v1146 = vmul.f32 %v1018, %v1145
        %v1147 = vrcp.pop %v1072
        %v1148 = vmul.f32 %v1020, %v1147
        %v1149 = vrcp.pop %v1078
        %v1150 = vmul.f32 %v1022, %v1149
        %v1151 = vrcp.pop %v1084
        %v1152 = vmul.f32 %v1024, %v1151
        %v1153 = vrcp.pop %v1090
        %v1154 = vmul.f32 %v1026, %v1153
        %v1155 = vrcp.pop %v1096
        %v1156 = vmul.f32 %v1028, %v1155
        %v1157 = vrcp.pop %v1102
        %v1158 = vmul.f32 %v1030, %v1157
        %v1159 = vrcp.pop %v1108
        %v1160 = vmul.f32 %v1032, %v1159
        %v1161 = vrcp.pop %v1114
        %v1162 = vmul.f32 %v1034, %v1161
        %v1163 = vrcp.pop %v1120
        %v1164 = vmul.f32 %v1036, %v1163
        %v1165 = vrcp.pop %v1126
        %v1166 = vmul.f32 %v1038, %v1165
        %v1167 = vrcp.pop %v1132
        %v1168 = vmul.f32 %v1040, %v1167
        %v1169 = vrcp.pop %v1138
        %v1170 = vmul.f32 %v1042, %v1169
        %v1171 = vlaneseq
        %v1172 = vand.u32 %v1171, 127
        %vm1173 = vcmp.lt.s32.totalorder %v1172, 2
        %v1174 = vsel %vm1173, %v1140, %v837
        %v1175 = vsel %vm1173, %v1142, %v840
        %v1176 = vsel %vm1173, %v1144, %v845
        %v1177 = vsel %vm1173, %v1146, %v848
        %v1178 = vsel %vm1173, %v1148, %v853
        %v1179 = vsel %vm1173, %v1150, %v856
        %v1180 = vsel %vm1173, %v1152, %v861
        %v1181 = vsel %vm1173, %v1154, %v864
        %v1182 = vsel %vm1173, %v1156, %v869
        %v1183 = vsel %vm1173, %v1158, %v872
        %v1184 = vsel %vm1173, %v1160, %v877
        %v1185 = vsel %vm1173, %v1162, %v880
        %v1186 = vsel %vm1173, %v1164, %v885
        %v1187 = vsel %vm1173, %v1166, %v888
        %v1188 = vsel %vm1173, %v1168, %v893
        %v1189 = vsel %vm1173, %v1170, %v896
        %1190 = vst [vmem:[%s343] sm:$0xff] %v1174
        %1191 = vst [vmem:[%s343 + $0x8] sm:$0xff] %v1175
        %1192 = vst [vmem:[%s343 + $0x10] sm:$0xff] %v1176
        %1193 = vst [vmem:[%s343 + $0x18] sm:$0xff] %v1177
        %1194 = vst [vmem:[%s343 + $0x20] sm:$0xff] %v1178
        %1195 = vst [vmem:[%s343 + $0x28] sm:$0xff] %v1179
        %1196 = vst [vmem:[%s343 + $0x30] sm:$0xff] %v1180
        %1197 = vst [vmem:[%s343 + $0x38] sm:$0xff] %v1181
        %1198 = vst [vmem:[%s343 + $0x40] sm:$0xff] %v1182
        %1199 = vst [vmem:[%s343 + $0x48] sm:$0xff] %v1183
        %1200 = vst [vmem:[%s343 + $0x50] sm:$0xff] %v1184
        %1201 = vst [vmem:[%s343 + $0x58] sm:$0xff] %v1185
        %1202 = vst [vmem:[%s343 + $0x60] sm:$0xff] %v1186
        %1203 = vst [vmem:[%s343 + $0x68] sm:$0xff] %v1187
        %1204 = vst [vmem:[%s343 + $0x70] sm:$0xff] %v1188
        %1205 = vst [vmem:[%s343 + $0x78] sm:$0xff] %v1189
        %s1206 = smul.u32 16, %s23
        %p1207 = scmp.lt.s32.totalorder %s1206, 31
        %s1208 = scalar_select %p1207, %s1206, 31
        %s1209 = smul.addr %s1208, 8
        %s1210 = scalar_lea.vmem %s7, %s1209
        // Predicated region
        $region65: #{prediction_forward.1} parent=47 // pred_check
          %p1211 = pneg %p193
        $region66: #{prediction_forward.1} parent=47 // pred_check_branch
          %1213 = sbr.rel (%p1211) target = $region68
        $region67: #{prediction_forward.1} parent=47 // pred_region
          %s1214 = smul.u32 16, %s23
        $region68: #{prediction_forward.1} parent=47 // pred_fallthru
          _
      $region48: #{prediction_forward.1} parent=5 // pred_fallthru
        _
      %p1215 = scmp.le.s32.totalorder 2, %s18
      // Predicated region
      $region69: #{prediction_forward.1} parent=5 // pred_check
        %p1216 = pneg %p1215
      $region70: #{prediction_forward.1} parent=5 // pred_check_branch
        %1218 = sbr.rel (%p1216) target = $region72
      $region71: #{prediction_forward.1} parent=5 // pred_region
        %s1219 = ssub.s32 %s18, 2
        // Predicated region
        $region73: #{prediction_forward.1} parent=71 // pred_check
          %p1220 = pneg %p199
        $region74: #{prediction_forward.1} parent=71 // pred_check_branch
          %1222 = sbr.rel (%p1220) target = $region76
        $region75: #{prediction_forward.1} parent=71 // pred_region
          %s1223 = smul.u32 16, %s24
          %p1224 = scmp.lt.s32.totalorder %s1223, 31
          %s1225 = scalar_select %p1224, %s1223, 31
          %s1226 = smul.addr %s1225, 8
          %s1227 = scalar_lea.vmem %s7, %s1226
        $region76: #{prediction_forward.1} parent=71 // pred_fallthru
          _
      $region72: #{prediction_forward.1} parent=5 // pred_fallthru
        _
    $region6: #{prediction_forward.1} parent=1 // loop_footer
      %s22 = sadd.s32 1, %s18
    $region7: #{prediction_forward.1} parent=1 // loop_footer_branch
      %17 = sbr.rel target = $region3
    $region8: #{prediction_forward.1} parent=1 // loop_exit
      _
    %1228 = vsyncpa [#allocation3], 1
    %s1229 = scalar_lea.sflag [#allocation3], 1
    %1230 = vsyncpa %s1229, 1
    %1231 = vsyncpa [#allocation5], 1
    %1232 = vsyncpa [#allocation8], 1

</llo_original>
